<compile_context>
chip_gen: v5e
topology: v5e:2x2
jax: 0.10.0
libtpu: 0.0.40
codegen_flags: <defaults>
</compile_context>

<pallas_src>
import jax
import jax.numpy as jnp
from jax.experimental import pallas as pl


def _fused_transformer_kernel(x_ref, wconv_ref, bconv_ref, pool_ref,
                              wfcT_ref, bfc_ref, heat_ref, paramsT_ref):
    """Single invocation: all T transformers, full batch, no grid.

    x_ref:       (C, B*HW)    input, batch+spatial folded onto the lane axis
    wconv_ref:   (T*K, C)     stacked 1x1-conv weights
    bconv_ref:   (T*K, 1)     stacked conv biases
    pool_ref:    (B*HW, B)    block-diagonal mean-pool matrix (1/HW entries)
    wfcT_ref:    (T*P, T*K)   block-diagonal fc weights (transposed)
    bfc_ref:     (T*P, 1)     stacked fc biases
    heat_ref:    (T*K, B*HW)  relu heatmaps (lane-dense output slab)
    paramsT_ref: (T*P, B)     affine params, transposed
    """
    # 1) 1x1 conv for all T transformers at once: one lane-dense MXU matmul,
    #    bias + relu on the VPU over the same vreg slab, one unmasked store.
    heat = jnp.dot(wconv_ref[...], x_ref[...],
                   preferred_element_type=jnp.float32)            # (T*K, B*HW)
    heat = jnp.maximum(heat + bconv_ref[...], 0.0)
    heat_ref[...] = heat

    # 2) Global mean pool as a second MXU matmul against the block-diagonal
    #    pooling matrix (replaces per-batch lane slicing + XLU reduces).
    pooled = jnp.dot(heat, pool_ref[...],
                     preferred_element_type=jnp.float32)          # (T*K, B)

    # 3) All T fc heads at once via the block-diagonal weight: one matmul,
    #    one store of the whole params slab.
    paramsT_ref[...] = (jnp.dot(wfcT_ref[...], pooled,
                                preferred_element_type=jnp.float32)
                        + bfc_ref[...])                           # (T*P, B)


def transformer_parallel_forward(x, wconv, bconv, wfc, bfc):
    """x: (B, C, H, W) NCHW float32.  Weights stacked over T transformers.

    Returns stacked (T, ...) arrays; the leading T axis corresponds to the
    per-transformer Python lists returned by the PyTorch module.
    """
    B, C, H, W = x.shape
    HW = H * W
    T, K, _ = wconv.shape
    P = wfc.shape[-1]
    TK, TP = T * K, T * P

    # ---- layout plumbing (outside the kernel, fused/folded by the jit) ----
    x2d = jnp.transpose(x, (1, 0, 2, 3)).reshape(C, B * HW)        # (C, B*HW)
    wconv_s = wconv.reshape(TK, C)                                  # (T*K, C)
    bconv_c = bconv.reshape(TK, 1)                                  # (T*K, 1)
    # Block-diagonal mean-pool matrix: pool[b*HW + j, b] = 1/HW.
    pool = jnp.repeat(jnp.eye(B, dtype=x.dtype), HW, axis=0) / HW   # (B*HW, B)
    # Block-diagonal fc weights so all T heads run as one matmul.
    eye_t = jnp.eye(T, dtype=wfc.dtype)
    wfc_blk = jnp.einsum('tu,tkp->tkup', eye_t, wfc).reshape(TK, TP)
    wfcT = wfc_blk.T                                                # (T*P, T*K)
    bfc_c = bfc.reshape(TP, 1)                                      # (T*P, 1)

    heat2d, paramsT = pl.pallas_call(
        _fused_transformer_kernel,
        out_shape=(
            jax.ShapeDtypeStruct((TK, B * HW), jnp.float32),
            jax.ShapeDtypeStruct((TP, B), jnp.float32),
        ),
    )(x2d, wconv_s, bconv_c, pool, wfcT, bfc_c)

    maps = heat2d.reshape(T, K, B, H, W).transpose(0, 2, 1, 3, 4)   # (T,B,K,H,W)
    params = paramsT.reshape(T, P, B).transpose(0, 2, 1)            # (T,B,P)

    # Per-transformer affine transforms, vectorized over (T, B).
    top = params.reshape(T, B, 2, 3)
    A = jnp.broadcast_to(jnp.eye(3, dtype=params.dtype), (T, B, 3, 3))
    A = A.at[:, :, :2, :].add(top)                                  # (T,B,3,3)

    # Sequential composition: transforms[i] = transforms[i-1] @ A[i]  (scan).
    def compose_step(carry, a_t):
        new = jnp.einsum('bij,bjk->bik', carry, a_t)
        return new, new

    _, rest = jax.lax.scan(compose_step, A[0], A[1:])
    transforms = jnp.concatenate([A[:1], rest], axis=0)             # (T,B,3,3)

    return {'transform': transforms, 'params': params, 'maps': maps}


def _reference_forward(x, wconv, bconv, wfc, bfc):
    """Pure-JAX reference for the kernel hot path."""
    B, C, H, W = x.shape
    T, K, _ = wconv.shape
    xf = x.reshape(B, C, H * W)
    heat = jnp.einsum('tkc,bcw->tbkw', wconv, xf) + bconv.reshape(T, 1, K, 1)
    heat = jnp.maximum(heat, 0.0)
    pooled = jnp.mean(heat, axis=-1)                                 # (T, B, K)
    params = jnp.einsum('tbk,tkp->tbp', pooled, wfc) + bfc.reshape(T, 1, -1)
    return heat, params


if __name__ == "__main__":
    # Small shapes consistent with the module: NCHW image input.
    B, C, H, W = 2, 4, 16, 16
    T = 3        # number of parallel transformers
    K = 8        # heatmap channels per transformer
    P = 6        # affine params (2x3)

    key = jax.random.PRNGKey(0)
    kx, kw1, kb1, kw2, kb2 = jax.random.split(key, 5)

    x = jax.random.normal(kx, (B, C, H, W), dtype=jnp.float32)
    wconv = 0.1 * jax.random.normal(kw1, (T, K, C), dtype=jnp.float32)
    bconv = 0.1 * jax.random.normal(kb1, (T, 1, K), dtype=jnp.float32)
    wfc = 0.1 * jax.random.normal(kw2, (T, K, P), dtype=jnp.float32)
    bfc = 0.1 * jax.random.normal(kb2, (T, 1, P), dtype=jnp.float32)

    fwd = jax.jit(transformer_parallel_forward)
    out = fwd(x, wconv, bconv, wfc, bfc)
    jax.block_until_ready(out)

    # Correctness check against a pure-JAX reference of the kernel hot path.
    ref_heat, ref_params = _reference_forward(x, wconv, bconv, wfc, bfc)
    kernel_heat = out['maps'].reshape(T, B, K, H * W)
    assert jnp.allclose(kernel_heat, ref_heat, atol=2e-3), "heatmap mismatch"
    assert jnp.allclose(out['params'], ref_params, atol=2e-3), "params mismatch"

    # Composition reference (sequential 3x3 products).
    ref_top = ref_params.reshape(T, B, 2, 3)
    ref_A = jnp.broadcast_to(jnp.eye(3, dtype=jnp.float32), (T, B, 3, 3))
    ref_A = ref_A.at[:, :, :2, :].add(ref_top)
    ref_tf = [ref_A[0]]
    for t in range(1, T):
        ref_tf.append(jnp.einsum('bij,bjk->bik', ref_tf[-1], ref_A[t]))
    ref_tf = jnp.stack(ref_tf)
    assert jnp.allclose(out['transform'], ref_tf, atol=2e-3), "transform mismatch"

    # Sanity on output structure mirroring the PyTorch dict (stacked over T).
    assert out['transform'].shape == (T, B, 3, 3)
    assert out['params'].shape == (T, B, P)
    assert out['maps'].shape == (T, B, K, H, W)

    print("KERNEL_OK")
</pallas_src>

<mosaic_0001>
module attributes {stable_mosaic.version = 11 : i64} {
  func.func @_fused_transformer_kernel(%arg0: memref<4x512xf32, #tpu.memory_space<vmem>>, %arg1: memref<24x4xf32, #tpu.memory_space<vmem>>, %arg2: memref<24x1xf32, #tpu.memory_space<vmem>>, %arg3: memref<512x2xf32, #tpu.memory_space<vmem>>, %arg4: memref<18x24xf32, #tpu.memory_space<vmem>>, %arg5: memref<18x1xf32, #tpu.memory_space<vmem>>, %arg6: memref<24x512xf32, #tpu.memory_space<vmem>>, %arg7: memref<18x2xf32, #tpu.memory_space<vmem>>) attributes {dimension_semantics = [], scalar_prefetch = 0 : i64, scratch_operands = 0 : i64, tpu.core_type = #tpu.core_type<tc>} {
    %c0 = arith.constant 0 : index
    %c0_0 = arith.constant 0 : index
    %0 = vector.load %arg1[%c0, %c0_0] : memref<24x4xf32, #tpu.memory_space<vmem>>, vector<24x4xf32>
    %c0_1 = arith.constant 0 : index
    %c0_2 = arith.constant 0 : index
    %1 = vector.load %arg0[%c0_1, %c0_2] : memref<4x512xf32, #tpu.memory_space<vmem>>, vector<4x512xf32>
    %cst = arith.constant dense<0.000000e+00> : vector<24x512xf32>
    %2 = tpu.matmul %0, %1, %cst {dimension_numbers = #tpu.dot_dimension_numbers<[1], [0], [0], [1], [0, 0, 1, 1], [], []>} : vector<24x4xf32>, vector<4x512xf32>, vector<24x512xf32> -> vector<24x512xf32>
    %c0_3 = arith.constant 0 : index
    %c0_4 = arith.constant 0 : index
    %3 = vector.load %arg2[%c0_3, %c0_4] : memref<24x1xf32, #tpu.memory_space<vmem>>, vector<24x1xf32>
    %4 = vector.broadcast %3 : vector<24x1xf32> to vector<24x512xf32>
    %5 = arith.addf %2, %4 : vector<24x512xf32>
    %cst_5 = arith.constant 0.000000e+00 : f32
    %6 = vector.broadcast %cst_5 : f32 to vector<24x512xf32>
    %7 = arith.maximumf %5, %6 : vector<24x512xf32>
    %c0_6 = arith.constant 0 : index
    %c0_7 = arith.constant 0 : index
    %8 = vector.load %arg6[%c0_6, %c0_7] : memref<24x512xf32, #tpu.memory_space<vmem>>, vector<24x512xf32>
    tpu.vector_store %arg6[%c0_6, %c0_7], %7 {strides = array<i32>} : memref<24x512xf32, #tpu.memory_space<vmem>>, vector<24x512xf32>,
    %c0_8 = arith.constant 0 : index
    %c0_9 = arith.constant 0 : index
    %9 = vector.load %arg3[%c0_8, %c0_9] : memref<512x2xf32, #tpu.memory_space<vmem>>, vector<512x2xf32>
    %cst_10 = arith.constant dense<0.000000e+00> : vector<24x2xf32>
    %10 = tpu.matmul %7, %9, %cst_10 {dimension_numbers = #tpu.dot_dimension_numbers<[1], [0], [0], [1], [0, 0, 1, 1], [], []>} : vector<24x512xf32>, vector<512x2xf32>, vector<24x2xf32> -> vector<24x2xf32>
    %c0_11 = arith.constant 0 : index
    %c0_12 = arith.constant 0 : index
    %11 = vector.load %arg4[%c0_11, %c0_12] : memref<18x24xf32, #tpu.memory_space<vmem>>, vector<18x24xf32>
    %cst_13 = arith.constant dense<0.000000e+00> : vector<18x2xf32>
    %12 = tpu.matmul %11, %10, %cst_13 {dimension_numbers = #tpu.dot_dimension_numbers<[1], [0], [0], [1], [0, 0, 1, 1], [], []>} : vector<18x24xf32>, vector<24x2xf32>, vector<18x2xf32> -> vector<18x2xf32>
    %c0_14 = arith.constant 0 : index
    %c0_15 = arith.constant 0 : index
    %13 = vector.load %arg5[%c0_14, %c0_15] : memref<18x1xf32, #tpu.memory_space<vmem>>, vector<18x1xf32>
    %14 = vector.broadcast %13 : vector<18x1xf32> to vector<18x2xf32>
    %15 = arith.addf %12, %14 : vector<18x2xf32>
    %c0_16 = arith.constant 0 : index
    %c0_17 = arith.constant 0 : index
    %16 = vector.load %arg7[%c0_16, %c0_17] : memref<18x2xf32, #tpu.memory_space<vmem>>, vector<18x2xf32>
    tpu.vector_store %arg7[%c0_16, %c0_17], %15 {strides = array<i32>} : memref<18x2xf32, #tpu.memory_space<vmem>>, vector<18x2xf32>,
    return
  }
}

</mosaic_0001>

<llo_original>
// kernel: custom-call
$region0: #{custom-call}
  %s0 = inlined_call_operand.vmem [shape: f32[2,2,3,3], index: 0, kind: output, shape index: {}]

// kernel: transformer_parallel_forward.1
$region0: #{transformer_parallel_forward.1}
  #allocation0 [shape = 'u32[]', space=smem, size = 0x4, offset = 0x4, fixed_abs, tag = 'smem constant byte address 0x4 - core index']
  #allocation1 [shape = 'u32[72,128]{1,0:T(1,128)}', space=vmem, size = 0x9000, scoped, tag = 'internal scratch']
  %s0 = inlined_call_operand.vmem [shape: f32[4,512], index: 0, kind: input, shape index: {}]
  %s1 = inlined_call_operand.vmem [shape: f32[24,4], index: 1, kind: input, shape index: {}]
  %s2 = inlined_call_operand.vmem [shape: f32[24,1], index: 2, kind: input, shape index: {}]
  %s3 = inlined_call_operand.vmem [shape: f32[512,2], index: 3, kind: input, shape index: {}]
  %s4 = inlined_call_operand.vmem [shape: f32[18,24], index: 4, kind: input, shape index: {}]
  %s5 = inlined_call_operand.vmem [shape: f32[18,1], index: 5, kind: input, shape index: {}]
  %s6 = inlined_call_operand.vmem [shape: f32[24,512], index: 6, kind: output, shape index: {0}]
  %s7 = inlined_call_operand.vmem [shape: f32[18,2], index: 7, kind: output, shape index: {1}]
  %8 = xla_tuple %s6, %s7
  %s9 = sld [smem:[#allocation0]]
  $region42: #{transformer_parallel_forward.1} parent=0
    _
  %s11 = ssub.s32 1, %s9
  %s12 = scalar_select 0, %s11, %s9
  // Predicated region
  $region2: #{transformer_parallel_forward.1} parent=0 // pred_check
    _
  $region3: #{transformer_parallel_forward.1} parent=0 // pred_check_branch
    %14 = sbr.rel (0) target = $region5
  $region4: #{transformer_parallel_forward.1} parent=0 // pred_region
    _
  $region5: #{transformer_parallel_forward.1} parent=0 // pred_fallthru
    _
  // Predicated region
  $region6: #{transformer_parallel_forward.1} parent=0 // pred_check
    _
  $region7: #{transformer_parallel_forward.1} parent=0 // pred_check_branch
    %16 = sbr.rel (0) target = $region9
  $region8: #{transformer_parallel_forward.1} parent=0 // pred_region
    _
  $region9: #{transformer_parallel_forward.1} parent=0 // pred_fallthru
    _
  // Predicated region
  $region10: #{transformer_parallel_forward.1} parent=0 // pred_check
    _
  $region11: #{transformer_parallel_forward.1} parent=0 // pred_check_branch
    %18 = sbr.rel (0) target = $region13
  $region12: #{transformer_parallel_forward.1} parent=0 // pred_region
    _
  $region13: #{transformer_parallel_forward.1} parent=0 // pred_fallthru
    _
  // Predicated region
  $region14: #{transformer_parallel_forward.1} parent=0 // pred_check
    _
  $region15: #{transformer_parallel_forward.1} parent=0 // pred_check_branch
    %20 = sbr.rel (0) target = $region17
  $region16: #{transformer_parallel_forward.1} parent=0 // pred_region
    _
  $region17: #{transformer_parallel_forward.1} parent=0 // pred_fallthru
    _
  // Predicated region
  $region18: #{transformer_parallel_forward.1} parent=0 // pred_check
    _
  $region19: #{transformer_parallel_forward.1} parent=0 // pred_check_branch
    %22 = sbr.rel (0) target = $region21
  $region20: #{transformer_parallel_forward.1} parent=0 // pred_region
    _
  $region21: #{transformer_parallel_forward.1} parent=0 // pred_fallthru
    _
  // Predicated region
  $region22: #{transformer_parallel_forward.1} parent=0 // pred_check
    _
  $region23: #{transformer_parallel_forward.1} parent=0 // pred_check_branch
    %24 = sbr.rel (0) target = $region25
  $region24: #{transformer_parallel_forward.1} parent=0 // pred_region
    _
  $region25: #{transformer_parallel_forward.1} parent=0 // pred_fallthru
    _
  %v25 = vld [vmem:[%s1] sm:$0xff]
  %v26 = vld [vmem:[%s1 + $0x8] sm:$0xff]
  %v27 = vld [vmem:[%s1 + $0x10] sm:$0xff]
  %v28 = vld [vmem:[%s0] sm:$0xff]
  %v29 = vld [vmem:[%s0 + $0x8] sm:$0xff]
  %v30 = vld [vmem:[%s2] sm:$0xff]
  %v31 = vld [vmem:[%s2 + $0x8] sm:$0xff]
  %v32 = vld [vmem:[%s2 + $0x10] sm:$0xff]
  %34 = vset.pattern.permute.xlu0 0
  %35 = vperm.xlu0 %34, %v30
  %v36 = vpop.permute.xlu0 %35
  %39 = vset.pattern.permute.xlu0 0
  %40 = vperm.xlu0 %39, %v31
  %v41 = vpop.permute.xlu0 %40
  %44 = vset.pattern.permute.xlu0 0
  %45 = vperm.xlu0 %44, %v32
  %v46 = vpop.permute.xlu0 %45
  %50 = vst [vmem:[#allocation1] ss:$2 sm:$0xff] %v28
  %s51 = scalar_lea.vmem [#allocation1], 16
  %52 = vst [vmem:[%s51] ss:$2 sm:$0xff] %v29
  %v53 = vld.sshfl [vmem:[#allocation1] sm:$0xff pattern:$0x75316420]
  %v54 = vld.sshfl [vmem:[#allocation1 + $0x8] sm:$0xff pattern:$0x75316420]
  %v55 = vld.sshfl [vmem:[#allocation1 + $0x10] sm:$0xff pattern:$0x75316420]
  %v56 = vld.sshfl [vmem:[#allocation1 + $0x18] sm:$0xff pattern:$0x75316420]
  %vm57 = vcmask 31744
  %v59 = vsel %vm57, %v25, 0
  %v62 = vsel %vm57, %v26, 0
  %v65 = vsel %vm57, %v27, 0
  %vm67 = vcmask 1043456
  %v68 = vsel %vm67, %v53, 0
  %v70 = vsel %vm67, %v54, 0
  %v72 = vsel %vm67, %v55, 0
  %v74 = vsel %vm67, %v56, 0
  %76 = vmatpush.msra.mxu0 0.0
  %77 = vmatpush.msra.mxu0 0.0
  %78 = vmatpush.msra.mxu0 0.0
  %79 = vmatpush.msra.mxu0 0.0
  %80 = vmatpush.msra.mxu0 0.0
  %81 = vmatpush.msra.mxu0 0.0
  %82 = vmatpush.msra.mxu0 0.0
  %83 = vmatpush.msra.mxu0 0.0
  %84 = vmatpush.msra.mxu0 0.0
  %85 = vmatpush.msra.mxu0 0.0
  %86 = vmatpush.msra.mxu0 0.0
  %87 = vmatpush.msra.mxu0 0.0
  %88 = vmatpush.msra.mxu0 0.0
  %89 = vmatpush.msra.mxu0 0.0
  %90 = vmatpush.msra.mxu0 0.0
  %91 = vmatpush.msra.mxu0 %v68
  %92 = vmatmul.f32.gmra.mxu0 %v59
  %v93 = vpop.f32.mrf.mxu0
  %v94 = vadd.f32 %v36, %v93
  %95 = vmatmul.f32.gmra.mxu0 %v62
  %v96 = vpop.f32.mrf.mxu0
  %v97 = vadd.f32 %v41, %v96
  %98 = vmatmul.f32.gmra.mxu0 %v65
  %v99 = vpop.f32.mrf.mxu0
  %v100 = vadd.f32 %v46, %v99
  %101 = vdwg.mxu0
  %102 = vmatpush.msra.mxu0 0.0
  %103 = vmatpush.msra.mxu0 0.0
  %104 = vmatpush.msra.mxu0 0.0
  %105 = vmatpush.msra.mxu0 0.0
  %106 = vmatpush.msra.mxu0 0.0
  %107 = vmatpush.msra.mxu0 0.0
  %108 = vmatpush.msra.mxu0 0.0
  %109 = vmatpush.msra.mxu0 0.0
  %110 = vmatpush.msra.mxu0 0.0
  %111 = vmatpush.msra.mxu0 0.0
  %112 = vmatpush.msra.mxu0 0.0
  %113 = vmatpush.msra.mxu0 0.0
  %114 = vmatpush.msra.mxu0 0.0
  %115 = vmatpush.msra.mxu0 0.0
  %116 = vmatpush.msra.mxu0 0.0
  %117 = vmatpush.msra.mxu0 %v70
  %118 = vmatmul.f32.gmra.mxu0 %v59
  %v119 = vpop.f32.mrf.mxu0
  %v120 = vadd.f32 %v36, %v119
  %121 = vmatmul.f32.gmra.mxu0 %v62
  %v122 = vpop.f32.mrf.mxu0
  %v123 = vadd.f32 %v41, %v122
  %124 = vmatmul.f32.gmra.mxu0 %v65
  %v125 = vpop.f32.mrf.mxu0
  %v126 = vadd.f32 %v46, %v125
  %127 = vdwg.mxu0
  %128 = vmatpush.msra.mxu0 0.0
  %129 = vmatpush.msra.mxu0 0.0
  %130 = vmatpush.msra.mxu0 0.0
  %131 = vmatpush.msra.mxu0 0.0
  %132 = vmatpush.msra.mxu0 0.0
  %133 = vmatpush.msra.mxu0 0.0
  %134 = vmatpush.msra.mxu0 0.0
  %135 = vmatpush.msra.mxu0 0.0
  %136 = vmatpush.msra.mxu0 0.0
  %137 = vmatpush.msra.mxu0 0.0
  %138 = vmatpush.msra.mxu0 0.0
  %139 = vmatpush.msra.mxu0 0.0
  %140 = vmatpush.msra.mxu0 0.0
  %141 = vmatpush.msra.mxu0 0.0
  %142 = vmatpush.msra.mxu0 0.0
  %143 = vmatpush.msra.mxu0 %v72
  %144 = vmatmul.f32.gmra.mxu0 %v59
  %v145 = vpop.f32.mrf.mxu0
  %v146 = vadd.f32 %v36, %v145
  %147 = vmatmul.f32.gmra.mxu0 %v62
  %v148 = vpop.f32.mrf.mxu0
  %v149 = vadd.f32 %v41, %v148
  %150 = vmatmul.f32.gmra.mxu0 %v65
  %v151 = vpop.f32.mrf.mxu0
  %v152 = vadd.f32 %v46, %v151
  %153 = vdwg.mxu0
  %154 = vmatpush.msra.mxu0 0.0
  %155 = vmatpush.msra.mxu0 0.0
  %156 = vmatpush.msra.mxu0 0.0
  %157 = vmatpush.msra.mxu0 0.0
  %158 = vmatpush.msra.mxu0 0.0
  %159 = vmatpush.msra.mxu0 0.0
  %160 = vmatpush.msra.mxu0 0.0
  %161 = vmatpush.msra.mxu0 0.0
  %162 = vmatpush.msra.mxu0 0.0
  %163 = vmatpush.msra.mxu0 0.0
  %164 = vmatpush.msra.mxu0 0.0
  %165 = vmatpush.msra.mxu0 0.0
  %166 = vmatpush.msra.mxu0 0.0
  %167 = vmatpush.msra.mxu0 0.0
  %168 = vmatpush.msra.mxu0 0.0
  %169 = vmatpush.msra.mxu0 %v74
  %170 = vmatmul.f32.gmra.mxu0 %v59
  %v171 = vpop.f32.mrf.mxu0
  %v172 = vadd.f32 %v36, %v171
  %173 = vmatmul.f32.gmra.mxu0 %v62
  %v174 = vpop.f32.mrf.mxu0
  %v175 = vadd.f32 %v41, %v174
  %176 = vmatmul.f32.gmra.mxu0 %v65
  %v177 = vpop.f32.mrf.mxu0
  %v178 = vadd.f32 %v46, %v177
  %179 = vdwg.mxu0
  %v180 = vmax.f32 %v94, 0.0
  %v181 = vmax.f32 %v120, 0.0
  %v182 = vmax.f32 %v146, 0.0
  %v183 = vmax.f32 %v172, 0.0
  %v184 = vmax.f32 %v97, 0.0
  %v185 = vmax.f32 %v123, 0.0
  %v186 = vmax.f32 %v149, 0.0
  %v187 = vmax.f32 %v175, 0.0
  %v188 = vmax.f32 %v100, 0.0
  %v189 = vmax.f32 %v126, 0.0
  %v190 = vmax.f32 %v152, 0.0
  %v191 = vmax.f32 %v178, 0.0
  %192 = vst [vmem:[%s6] sm:$0xff] %v180
  %193 = vst [vmem:[%s6 + $0x8] sm:$0xff] %v181
  %194 = vst [vmem:[%s6 + $0x10] sm:$0xff] %v182
  %195 = vst [vmem:[%s6 + $0x18] sm:$0xff] %v183
  %196 = vst [vmem:[%s6 + $0x20] sm:$0xff] %v184
  %197 = vst [vmem:[%s6 + $0x28] sm:$0xff] %v185
  %198 = vst [vmem:[%s6 + $0x30] sm:$0xff] %v186
  %199 = vst [vmem:[%s6 + $0x38] sm:$0xff] %v187
  %200 = vst [vmem:[%s6 + $0x40] sm:$0xff] %v188
  %201 = vst [vmem:[%s6 + $0x48] sm:$0xff] %v189
  %202 = vst [vmem:[%s6 + $0x50] sm:$0xff] %v190
  %203 = vst [vmem:[%s6 + $0x58] sm:$0xff] %v191
  %v204 = vld [vmem:[%s3] sm:$0xff]
  %v205 = vld [vmem:[%s3 + $0x8] sm:$0xff]
  %v206 = vld [vmem:[%s3 + $0x10] sm:$0xff]
  %v207 = vld [vmem:[%s3 + $0x18] sm:$0xff]
  %v208 = vld [vmem:[%s3 + $0x20] sm:$0xff]
  %v209 = vld [vmem:[%s3 + $0x28] sm:$0xff]
  %v210 = vld [vmem:[%s3 + $0x30] sm:$0xff]
  %v211 = vld [vmem:[%s3 + $0x38] sm:$0xff]
  %v212 = vld [vmem:[%s3 + $0x40] sm:$0xff]
  %v213 = vld [vmem:[%s3 + $0x48] sm:$0xff]
  %v214 = vld [vmem:[%s3 + $0x50] sm:$0xff]
  %v215 = vld [vmem:[%s3 + $0x58] sm:$0xff]
  %v216 = vld [vmem:[%s3 + $0x60] sm:$0xff]
  %v217 = vld [vmem:[%s3 + $0x68] sm:$0xff]
  %v218 = vld [vmem:[%s3 + $0x70] sm:$0xff]
  %v219 = vld [vmem:[%s3 + $0x78] sm:$0xff]
  %v220 = vld [vmem:[%s3 + $0x80] sm:$0xff]
  %v221 = vld [vmem:[%s3 + $0x88] sm:$0xff]
  %v222 = vld [vmem:[%s3 + $0x90] sm:$0xff]
  %v223 = vld [vmem:[%s3 + $0x98] sm:$0xff]
  %v224 = vld [vmem:[%s3 + $0xa0] sm:$0xff]
  %v225 = vld [vmem:[%s3 + $0xa8] sm:$0xff]
  %v226 = vld [vmem:[%s3 + $0xb0] sm:$0xff]
  %v227 = vld [vmem:[%s3 + $0xb8] sm:$0xff]
  %v228 = vld [vmem:[%s3 + $0xc0] sm:$0xff]
  %v229 = vld [vmem:[%s3 + $0xc8] sm:$0xff]
  %v230 = vld [vmem:[%s3 + $0xd0] sm:$0xff]
  %v231 = vld [vmem:[%s3 + $0xd8] sm:$0xff]
  %v232 = vld [vmem:[%s3 + $0xe0] sm:$0xff]
  %v233 = vld [vmem:[%s3 + $0xe8] sm:$0xff]
  %v234 = vld [vmem:[%s3 + $0xf0] sm:$0xff]
  %v235 = vld [vmem:[%s3 + $0xf8] sm:$0xff]
  %v236 = vld [vmem:[%s3 + $0x100] sm:$0xff]
  %v237 = vld [vmem:[%s3 + $0x108] sm:$0xff]
  %v238 = vld [vmem:[%s3 + $0x110] sm:$0xff]
  %v239 = vld [vmem:[%s3 + $0x118] sm:$0xff]
  %v240 = vld [vmem:[%s3 + $0x120] sm:$0xff]
  %v241 = vld [vmem:[%s3 + $0x128] sm:$0xff]
  %v242 = vld [vmem:[%s3 + $0x130] sm:$0xff]
  %v243 = vld [vmem:[%s3 + $0x138] sm:$0xff]
  %v244 = vld [vmem:[%s3 + $0x140] sm:$0xff]
  %v245 = vld [vmem:[%s3 + $0x148] sm:$0xff]
  %v246 = vld [vmem:[%s3 + $0x150] sm:$0xff]
  %v247 = vld [vmem:[%s3 + $0x158] sm:$0xff]
  %v248 = vld [vmem:[%s3 + $0x160] sm:$0xff]
  %v249 = vld [vmem:[%s3 + $0x168] sm:$0xff]
  %v250 = vld [vmem:[%s3 + $0x170] sm:$0xff]
  %v251 = vld [vmem:[%s3 + $0x178] sm:$0xff]
  %v252 = vld [vmem:[%s3 + $0x180] sm:$0xff]
  %v253 = vld [vmem:[%s3 + $0x188] sm:$0xff]
  %v254 = vld [vmem:[%s3 + $0x190] sm:$0xff]
  %v255 = vld [vmem:[%s3 + $0x198] sm:$0xff]
  %v256 = vld [vmem:[%s3 + $0x1a0] sm:$0xff]
  %v257 = vld [vmem:[%s3 + $0x1a8] sm:$0xff]
  %v258 = vld [vmem:[%s3 + $0x1b0] sm:$0xff]
  %v259 = vld [vmem:[%s3 + $0x1b8] sm:$0xff]
  %v260 = vld [vmem:[%s3 + $0x1c0] sm:$0xff]
  %v261 = vld [vmem:[%s3 + $0x1c8] sm:$0xff]
  %v262 = vld [vmem:[%s3 + $0x1d0] sm:$0xff]
  %v263 = vld [vmem:[%s3 + $0x1d8] sm:$0xff]
  %v264 = vld [vmem:[%s3 + $0x1e0] sm:$0xff]
  %v265 = vld [vmem:[%s3 + $0x1e8] sm:$0xff]
  %v266 = vld [vmem:[%s3 + $0x1f0] sm:$0xff]
  %v267 = vld [vmem:[%s3 + $0x1f8] sm:$0xff]
  %268 = vmatpush.msra.mxu0 %v219
  %269 = vmatpush.msra.mxu0 %v218
  %270 = vmatpush.msra.mxu0 %v217
  %271 = vmatpush.msra.mxu0 %v216
  %272 = vmatpush.msra.mxu0 %v215
  %273 = vmatpush.msra.mxu0 %v214
  %274 = vmatpush.msra.mxu0 %v213
  %275 = vmatpush.msra.mxu0 %v212
  %276 = vmatpush.msra.mxu0 %v211
  %277 = vmatpush.msra.mxu0 %v210
  %278 = vmatpush.msra.mxu0 %v209
  %279 = vmatpush.msra.mxu0 %v208
  %280 = vmatpush.msra.mxu0 %v207
  %281 = vmatpush.msra.mxu0 %v206
  %282 = vmatpush.msra.mxu0 %v205
  %283 = vmatpush.msra.mxu0 %v204
  %284 = vmatmul.f32.gmra.mxu0 %v180
  %v285 = vpop.f32.mrf.mxu0
  %v286 = vadd.f32 0.0, %v285
  %287 = vmatmul.f32.gmra.mxu0 %v184
  %v288 = vpop.f32.mrf.mxu0
  %v289 = vadd.f32 0.0, %v288
  %290 = vmatmul.f32.gmra.mxu0 %v188
  %v291 = vpop.f32.mrf.mxu0
  %v292 = vadd.f32 0.0, %v291
  %293 = vdwg.mxu0
  %294 = vmatpush.msra.mxu0 %v235
  %295 = vmatpush.msra.mxu0 %v234
  %296 = vmatpush.msra.mxu0 %v233
  %297 = vmatpush.msra.mxu0 %v232
  %298 = vmatpush.msra.mxu0 %v231
  %299 = vmatpush.msra.mxu0 %v230
  %300 = vmatpush.msra.mxu0 %v229
  %301 = vmatpush.msra.mxu0 %v228
  %302 = vmatpush.msra.mxu0 %v227
  %303 = vmatpush.msra.mxu0 %v226
  %304 = vmatpush.msra.mxu0 %v225
  %305 = vmatpush.msra.mxu0 %v224
  %306 = vmatpush.msra.mxu0 %v223
  %307 = vmatpush.msra.mxu0 %v222
  %308 = vmatpush.msra.mxu0 %v221
  %309 = vmatpush.msra.mxu0 %v220
  %310 = vmatmul.f32.gmra.mxu0 %v181
  %v311 = vpop.f32.mrf.mxu0
  %v312 = vadd.f32 %v286, %v311
  %313 = vmatmul.f32.gmra.mxu0 %v185
  %v314 = vpop.f32.mrf.mxu0
  %v315 = vadd.f32 %v289, %v314
  %316 = vmatmul.f32.gmra.mxu0 %v189
  %v317 = vpop.f32.mrf.mxu0
  %v318 = vadd.f32 %v292, %v317
  %319 = vdwg.mxu0
  %320 = vmatpush.msra.mxu0 %v251
  %321 = vmatpush.msra.mxu0 %v250
  %322 = vmatpush.msra.mxu0 %v249
  %323 = vmatpush.msra.mxu0 %v248
  %324 = vmatpush.msra.mxu0 %v247
  %325 = vmatpush.msra.mxu0 %v246
  %326 = vmatpush.msra.mxu0 %v245
  %327 = vmatpush.msra.mxu0 %v244
  %328 = vmatpush.msra.mxu0 %v243
  %329 = vmatpush.msra.mxu0 %v242
  %330 = vmatpush.msra.mxu0 %v241
  %331 = vmatpush.msra.mxu0 %v240
  %332 = vmatpush.msra.mxu0 %v239
  %333 = vmatpush.msra.mxu0 %v238
  %334 = vmatpush.msra.mxu0 %v237
  %335 = vmatpush.msra.mxu0 %v236
  %336 = vmatmul.f32.gmra.mxu0 %v182
  %v337 = vpop.f32.mrf.mxu0
  %v338 = vadd.f32 %v312, %v337
  %339 = vmatmul.f32.gmra.mxu0 %v186
  %v340 = vpop.f32.mrf.mxu0
  %v341 = vadd.f32 %v315, %v340
  %342 = vmatmul.f32.gmra.mxu0 %v190
  %v343 = vpop.f32.mrf.mxu0
  %v344 = vadd.f32 %v318, %v343
  %345 = vdwg.mxu0
  %346 = vmatpush.msra.mxu0 %v267
  %347 = vmatpush.msra.mxu0 %v266
  %348 = vmatpush.msra.mxu0 %v265
  %349 = vmatpush.msra.mxu0 %v264
  %350 = vmatpush.msra.mxu0 %v263
  %351 = vmatpush.msra.mxu0 %v262
  %352 = vmatpush.msra.mxu0 %v261
  %353 = vmatpush.msra.mxu0 %v260
  %354 = vmatpush.msra.mxu0 %v259
  %355 = vmatpush.msra.mxu0 %v258
  %356 = vmatpush.msra.mxu0 %v257
  %357 = vmatpush.msra.mxu0 %v256
  %358 = vmatpush.msra.mxu0 %v255
  %359 = vmatpush.msra.mxu0 %v254
  %360 = vmatpush.msra.mxu0 %v253
  %361 = vmatpush.msra.mxu0 %v252
  %362 = vmatmul.f32.gmra.mxu0 %v183
  %v363 = vpop.f32.mrf.mxu0
  %v364 = vadd.f32 %v338, %v363
  %365 = vmatmul.f32.gmra.mxu0 %v187
  %v366 = vpop.f32.mrf.mxu0
  %v367 = vadd.f32 %v341, %v366
  %368 = vmatmul.f32.gmra.mxu0 %v191
  %v369 = vpop.f32.mrf.mxu0
  %v370 = vadd.f32 %v344, %v369
  %371 = vdwg.mxu0
  %v372 = vld [vmem:[%s4] sm:$0xff]
  %v373 = vld [vmem:[%s4 + $0x8] sm:$0xff]
  %v374 = vld [vmem:[%s4 + $0x10] sm:$0x3]
  %v375 = vld [vmem:[%s5] sm:$0xff]
  %v376 = vld [vmem:[%s5 + $0x8] sm:$0xff]
  %v377 = vld [vmem:[%s5 + $0x10] sm:$0x3]
  %379 = vset.pattern.permute.xlu0 0
  %380 = vperm.xlu0 %379, %v375
  %v381 = vpop.permute.xlu0 %380
  %384 = vset.pattern.permute.xlu0 0
  %385 = vperm.xlu0 %384, %v376
  %v386 = vpop.permute.xlu0 %385
  %389 = vset.pattern.permute.xlu0 0
  %390 = vperm.xlu0 %389, %v377
  %v391 = vpop.permute.xlu0 %390
  %vm393 = vcmask 195584
  %v395 = vsel %vm393, %v372, 0
  %v398 = vsel %vm393, %v373, 0
  %v401 = vsel %vm393, %v374, 0
  %403 = vmatpush.msra.mxu0 0.0
  %404 = vmatpush.msra.mxu0 0.0
  %405 = vmatpush.msra.mxu0 0.0
  %406 = vmatpush.msra.mxu0 0.0
  %407 = vmatpush.msra.mxu0 0.0
  %408 = vmatpush.msra.mxu0 0.0
  %409 = vmatpush.msra.mxu0 0.0
  %410 = vmatpush.msra.mxu0 0.0
  %411 = vmatpush.msra.mxu0 0.0
  %412 = vmatpush.msra.mxu0 0.0
  %413 = vmatpush.msra.mxu0 0.0
  %414 = vmatpush.msra.mxu0 0.0
  %415 = vmatpush.msra.mxu0 0.0
  %416 = vmatpush.msra.mxu0 %v370
  %417 = vmatpush.msra.mxu0 %v367
  %418 = vmatpush.msra.mxu0 %v364
  %419 = vmatmul.f32.gmra.mxu0 %v395
  %v420 = vpop.f32.mrf.mxu0
  %v421 = vadd.f32 %v381, %v420
  %422 = vmatmul.f32.gmra.mxu0 %v398
  %v423 = vpop.f32.mrf.mxu0
  %v424 = vadd.f32 %v386, %v423
  %425 = vmatmul.f32.gmra.mxu0 %v401
  %v426 = vpop.f32.mrf.mxu0
  %v427 = vadd.f32 %v391, %v426
  %428 = vdwg.mxu0
  %vm429 = vcmask 15360
  %430 = vst.msk [vmem:[%s7] sm:$0xff] %vm429, %v421
  %431 = vst.msk [vmem:[%s7 + $0x8] sm:$0xff] %vm429, %v424
  %vm432 = vcmask 9216
  %433 = vst.msk [vmem:[%s7 + $0x10] sm:$0x3] %vm432, %v427
  // Predicated region
  $region26: #{transformer_parallel_forward.1} parent=0 // pred_check
    _
  $region27: #{transformer_parallel_forward.1} parent=0 // pred_check_branch
    %435 = sbr.rel (0) target = $region29
  $region28: #{transformer_parallel_forward.1} parent=0 // pred_region
    _
  $region29: #{transformer_parallel_forward.1} parent=0 // pred_fallthru
    _
  // Predicated region
  $region30: #{transformer_parallel_forward.1} parent=0 // pred_check
    _
  $region31: #{transformer_parallel_forward.1} parent=0 // pred_check_branch
    %437 = sbr.rel (0) target = $region33
  $region32: #{transformer_parallel_forward.1} parent=0 // pred_region
    _
  $region33: #{transformer_parallel_forward.1} parent=0 // pred_fallthru
    _
  // Predicated region
  $region34: #{transformer_parallel_forward.1} parent=0 // pred_check
    _
  $region35: #{transformer_parallel_forward.1} parent=0 // pred_check_branch
    %439 = sbr.rel (0) target = $region37
  $region36: #{transformer_parallel_forward.1} parent=0 // pred_region
    _
  $region37: #{transformer_parallel_forward.1} parent=0 // pred_fallthru
    _
  // Predicated region
  $region38: #{transformer_parallel_forward.1} parent=0 // pred_check
    _
  $region39: #{transformer_parallel_forward.1} parent=0 // pred_check_branch
    %441 = sbr.rel (0) target = $region41
  $region40: #{transformer_parallel_forward.1} parent=0 // pred_region
    _
  $region41: #{transformer_parallel_forward.1} parent=0 // pred_fallthru
    _

</llo_original>
